<compile_context>
chip_gen: v5e
topology: v5e:2x2
jax: 0.10.0
libtpu: 0.0.40
codegen_flags: <defaults>
</compile_context>

<pallas_src>
import functools

import jax
import jax.numpy as jnp
from jax.experimental import pallas as pl
from jax.experimental.pallas import tpu as pltpu

LANES = 128
SUBLANES = 8
TILE_ROWS_MAX = 4096          # 4096 x 128 x 4B = 2 MiB per f32 input block
NSPLIT = 2                    # leading "parallel" grid axis (both TCs on v7x)


def _dice_kernel(p_ref, t_ref, out_ref, inter_acc, sum_acc, *,
                 n, tile_rows, total_blocks, steps):
    c = pl.program_id(0)          # parallel (core-split) axis
    i = pl.program_id(1)          # arbitrary (reduction) axis
    blk = c * steps + i           # logical row-block index (may overrun)

    @pl.when(i == 0)
    def _():
        inter_acc[...] = jnp.zeros_like(inter_acc)
        sum_acc[...] = jnp.zeros_like(sum_acc)

    groups = tile_rows // SUBLANES
    n_full_rows = n // LANES      # static Python ints (no int32 overflow)
    n_rem = n % LANES

    row0 = blk * tile_rows
    is_real = blk < total_blocks                   # not a clamped duplicate
    is_full = (row0 + tile_rows) <= n_full_rows    # block fully inside n

    def _accumulate(p_vals, t_vals):
        # Fold the (tile_rows, 128) tile into the (8, 128) accumulators with
        # pure VPU vreg adds; single cross-lane reduce happens in the wrapper.
        inter_acc[...] += jnp.sum(
            (p_vals * t_vals).reshape(groups, SUBLANES, LANES), axis=0)
        sum_acc[...] += jnp.sum(
            (p_vals + t_vals).reshape(groups, SUBLANES, LANES), axis=0)

    # Steady-state path: full blocks need no mask at all.
    @pl.when(jnp.logical_and(is_real, is_full))
    def _():
        _accumulate(jax.nn.sigmoid(p_ref[...].astype(jnp.float32)),
                    t_ref[...].astype(jnp.float32))

    # Boundary path: only the block straddling `n` pays for the iota mask.
    @pl.when(jnp.logical_and(is_real, jnp.logical_not(is_full)))
    def _():
        row_ids = row0 + jax.lax.broadcasted_iota(
            jnp.int32, (tile_rows, LANES), 0)
        col_ids = jax.lax.broadcasted_iota(jnp.int32, (tile_rows, LANES), 1)
        valid = (row_ids < n_full_rows) | (
            (row_ids == n_full_rows) & (col_ids < n_rem))
        p_vals = jnp.where(valid,
                           jax.nn.sigmoid(p_ref[...].astype(jnp.float32)), 0.0)
        t_vals = jnp.where(valid, t_ref[...].astype(jnp.float32), 0.0)
        _accumulate(p_vals, t_vals)

    # Per-core finalize: write lane-dense (8,128) partials, combined in wrapper.
    @pl.when(i == pl.num_programs(1) - 1)
    def _():
        out_ref[0, 0] = inter_acc[...]
        out_ref[0, 1] = sum_acc[...]


def dice_loss(p, t, smooth=1.0):
    """Pallas TPU implementation of DiceLoss.forward(p, t)."""
    assert p.shape == t.shape, "p and t must have the same shape"
    n = int(p.size)
    assert n > 0

    p_flat = p.reshape(-1)
    t_flat = t.reshape(-1)

    # Pad only if the flat length is not a multiple of 128 (lane width) or
    # yields fewer than 8 rows.  Pad values are ignored by the boundary mask,
    # so the fill value is irrelevant.  For typical NCHW tensors this is a
    # no-op (zero copies).
    pad = (-n) % LANES
    if (n + pad) // LANES < SUBLANES:
        pad = SUBLANES * LANES - n
    if pad:
        p_flat = jnp.pad(p_flat, (0, pad))
        t_flat = jnp.pad(t_flat, (0, pad))

    rows = (n + pad) // LANES                 # >= 8
    p2d = p_flat.reshape(rows, LANES)
    t2d = t_flat.reshape(rows, LANES)

    tile_rows = min(TILE_ROWS_MAX, (rows // SUBLANES) * SUBLANES)
    total_blocks = pl.cdiv(rows, tile_rows)
    steps = pl.cdiv(total_blocks, NSPLIT)
    grid = (NSPLIT, steps)

    def in_index_map(c, i):
        # Clamp so the DMA never reads past the array; clamped duplicates are
        # skipped in-kernel via the `is_real` gate.
        return (jnp.minimum(c * steps + i, total_blocks - 1), 0)

    kernel = functools.partial(_dice_kernel, n=n, tile_rows=tile_rows,
                               total_blocks=total_blocks, steps=steps)

    partials = pl.pallas_call(
        kernel,
        out_shape=jax.ShapeDtypeStruct((NSPLIT, 2, SUBLANES, LANES),
                                       jnp.float32),
        grid_spec=pltpu.PrefetchScalarGridSpec(
            num_scalar_prefetch=0,
            grid=grid,
            in_specs=[
                pl.BlockSpec((tile_rows, LANES), in_index_map),
                pl.BlockSpec((tile_rows, LANES), in_index_map),
            ],
            out_specs=pl.BlockSpec((1, 2, SUBLANES, LANES),
                                   lambda c, i: (c, 0, 0, 0)),
            scratch_shapes=[
                pltpu.VMEM((SUBLANES, LANES), jnp.float32),  # sum(sig(p) * t)
                pltpu.VMEM((SUBLANES, LANES), jnp.float32),  # sum(sig(p) + t)
            ],
        ),
        compiler_params=pltpu.CompilerParams(
            dimension_semantics=("parallel", "arbitrary")),
    )(p2d, t2d)

    # Tiny wrapper-side epilogue: combine the per-core partials.
    inter = jnp.sum(partials[:, 0])
    total = jnp.sum(partials[:, 1])
    smooth = jnp.float32(smooth)
    return 1.0 - (2.0 * inter + smooth) / (total + smooth)


def dice_loss_ref(p, t, smooth=1.0):
    """Pure-JAX reference matching the PyTorch module."""
    ps = jax.nn.sigmoid(p.astype(jnp.float32)).reshape(-1)
    ts = t.astype(jnp.float32).reshape(-1)
    inter = jnp.sum(ps * ts)
    return 1.0 - (2.0 * inter + smooth) / (jnp.sum(ps) + jnp.sum(ts) + smooth)


if __name__ == "__main__":
    key = jax.random.PRNGKey(0)
    k1, k2 = jax.random.split(key)

    # Logits p and binary-ish target t, NCHW.
    p = jax.random.normal(k1, (2, 4, 16, 16), dtype=jnp.float32)
    t = (jax.random.uniform(k2, (2, 4, 16, 16)) > 0.5).astype(jnp.float32)

    loss = jax.block_until_ready(dice_loss(p, t, smooth=1.0))
    ref = jax.block_until_ready(dice_loss_ref(p, t, smooth=1.0))

    assert jnp.allclose(loss, ref, rtol=1e-5, atol=1e-5), (loss, ref)
    print("KERNEL_OK")
</pallas_src>

<mosaic_0001>
module attributes {stable_mosaic.version = 11 : i64} {
  func.func @_dice_kernel(%arg0: i32, %arg1: i32, %arg2: memref<16x128xf32, #tpu.memory_space<vmem>>, %arg3: memref<16x128xf32, #tpu.memory_space<vmem>>, %arg4: memref<1x2x8x128xf32, #tpu.memory_space<vmem>>, %arg5: memref<8x128xf32, #tpu.memory_space<vmem>>, %arg6: memref<8x128xf32, #tpu.memory_space<vmem>>) attributes {dimension_semantics = [#tpu.dimension_semantics<parallel>, #tpu.dimension_semantics<arbitrary>], iteration_bounds = array<i64: 2, 1>, scalar_prefetch = 0 : i64, scratch_operands = 2 : i64, tpu.core_type = #tpu.core_type<tc>, window_params = [{transform_indices = @transform_0, window_bounds = array<i64: 16, 128>}, {transform_indices = @transform_1, window_bounds = array<i64: 16, 128>}, {transform_indices = @transform_2, window_bounds = array<i64: 1, 2, 8, 128>}]} {
    %c1_i32 = arith.constant 1 : i32
    %0 = arith.muli %arg0, %c1_i32 : i32
    %1 = arith.addi %0, %arg1 : i32
    %c0_i32 = arith.constant 0 : i32
    %2 = arith.cmpi eq, %arg1, %c0_i32 : i32
    %3 = arith.extui %2 : i1 to i32
    %c0_i32_0 = arith.constant 0 : i32
    %4 = arith.cmpi ne, %3, %c0_i32_0 : i32
    scf.if %4 {
      %cst = arith.constant 0.000000e+00 : f32
      %19 = vector.broadcast %cst : f32 to vector<8x128xf32>
      %c0 = arith.constant 0 : index
      %c0_8 = arith.constant 0 : index
      %20 = vector.load %arg5[%c0, %c0_8] : memref<8x128xf32, #tpu.memory_space<vmem>>, vector<8x128xf32>
      tpu.vector_store %arg5[%c0, %c0_8], %19 {strides = array<i32>} : memref<8x128xf32, #tpu.memory_space<vmem>>, vector<8x128xf32>,
      %cst_9 = arith.constant 0.000000e+00 : f32
      %21 = vector.broadcast %cst_9 : f32 to vector<8x128xf32>
      %c0_10 = arith.constant 0 : index
      %c0_11 = arith.constant 0 : index
      %22 = vector.load %arg6[%c0_10, %c0_11] : memref<8x128xf32, #tpu.memory_space<vmem>>, vector<8x128xf32>
      tpu.vector_store %arg6[%c0_10, %c0_11], %21 {strides = array<i32>} : memref<8x128xf32, #tpu.memory_space<vmem>>, vector<8x128xf32>,
    } else {
    }
    %c16_i32 = arith.constant 16 : i32
    %5 = arith.muli %1, %c16_i32 : i32
    %c1_i32_1 = arith.constant 1 : i32
    %6 = arith.cmpi slt, %1, %c1_i32_1 : i32
    %c16_i32_2 = arith.constant 16 : i32
    %7 = arith.addi %5, %c16_i32_2 : i32
    %c16_i32_3 = arith.constant 16 : i32
    %8 = arith.cmpi sle, %7, %c16_i32_3 : i32
    %9 = arith.andi %6, %8 : i1
    %10 = arith.extui %9 : i1 to i32
    %c0_i32_4 = arith.constant 0 : i32
    %11 = arith.cmpi ne, %10, %c0_i32_4 : i32
    scf.if %11 {
      %c0 = arith.constant 0 : index
      %c0_8 = arith.constant 0 : index
      %19 = vector.load %arg2[%c0, %c0_8] : memref<16x128xf32, #tpu.memory_space<vmem>>, vector<16x128xf32>
      %20 = arith.negf %19 : vector<16x128xf32>
      %21 = math.exp %20 : vector<16x128xf32>
      %cst = arith.constant 1.000000e+00 : f32
      %22 = vector.broadcast %cst : f32 to vector<16x128xf32>
      %23 = arith.addf %22, %21 : vector<16x128xf32>
      %24 = arith.divf %22, %23 : vector<16x128xf32>
      %c0_9 = arith.constant 0 : index
      %c0_10 = arith.constant 0 : index
      %25 = vector.load %arg3[%c0_9, %c0_10] : memref<16x128xf32, #tpu.memory_space<vmem>>, vector<16x128xf32>
      %c0_11 = arith.constant 0 : index
      %c0_12 = arith.constant 0 : index
      %26 = vector.load %arg5[%c0_11, %c0_12] : memref<8x128xf32, #tpu.memory_space<vmem>>, vector<8x128xf32>
      %27 = arith.mulf %24, %25 : vector<16x128xf32>
      %28 = vector.shape_cast %27 : vector<16x128xf32> to vector<2x8x128xf32>
      %cst_13 = arith.constant dense<0.000000e+00> : vector<8x128xf32>
      %29 = vector.multi_reduction <add>, %28, %cst_13 [0] : vector<2x8x128xf32> to vector<8x128xf32>
      %30 = arith.addf %26, %29 : vector<8x128xf32>
      %c0_14 = arith.constant 0 : index
      %c0_15 = arith.constant 0 : index
      %31 = vector.load %arg5[%c0_14, %c0_15] : memref<8x128xf32, #tpu.memory_space<vmem>>, vector<8x128xf32>
      tpu.vector_store %arg5[%c0_14, %c0_15], %30 {strides = array<i32>} : memref<8x128xf32, #tpu.memory_space<vmem>>, vector<8x128xf32>,
      %c0_16 = arith.constant 0 : index
      %c0_17 = arith.constant 0 : index
      %32 = vector.load %arg6[%c0_16, %c0_17] : memref<8x128xf32, #tpu.memory_space<vmem>>, vector<8x128xf32>
      %33 = arith.addf %24, %25 : vector<16x128xf32>
      %34 = vector.shape_cast %33 : vector<16x128xf32> to vector<2x8x128xf32>
      %cst_18 = arith.constant dense<0.000000e+00> : vector<8x128xf32>
      %35 = vector.multi_reduction <add>, %34, %cst_18 [0] : vector<2x8x128xf32> to vector<8x128xf32>
      %36 = arith.addf %32, %35 : vector<8x128xf32>
      %c0_19 = arith.constant 0 : index
      %c0_20 = arith.constant 0 : index
      %37 = vector.load %arg6[%c0_19, %c0_20] : memref<8x128xf32, #tpu.memory_space<vmem>>, vector<8x128xf32>
      tpu.vector_store %arg6[%c0_19, %c0_20], %36 {strides = array<i32>} : memref<8x128xf32, #tpu.memory_space<vmem>>, vector<8x128xf32>,
    } else {
    }
    %true = arith.constant true
    %12 = arith.xori %8, %true : i1
    %13 = arith.andi %6, %12 : i1
    %14 = arith.extui %13 : i1 to i32
    %c0_i32_5 = arith.constant 0 : i32
    %15 = arith.cmpi ne, %14, %c0_i32_5 : i32
    scf.if %15 {
      %19 = tpu.iota {dimensions = array<i32: 0>} : vector<16x128xi32>
      %20 = vector.broadcast %5 : i32 to vector<16x128xi32>
      %21 = arith.addi %20, %19 : vector<16x128xi32>
      %22 = tpu.iota {dimensions = array<i32: 1>} : vector<16x128xi32>
      %c16_i32_8 = arith.constant 16 : i32
      %23 = vector.broadcast %c16_i32_8 : i32 to vector<16x128xi32>
      %24 = arith.cmpi slt, %21, %23 : vector<16x128xi32>
      %c16_i32_9 = arith.constant 16 : i32
      %25 = vector.broadcast %c16_i32_9 : i32 to vector<16x128xi32>
      %26 = arith.cmpi eq, %21, %25 : vector<16x128xi32>
      %c0_i32_10 = arith.constant 0 : i32
      %27 = vector.broadcast %c0_i32_10 : i32 to vector<16x128xi32>
      %28 = arith.cmpi slt, %22, %27 : vector<16x128xi32>
      %29 = arith.andi %26, %28 : vector<16x128xi1>
      %30 = arith.ori %24, %29 : vector<16x128xi1>
      %c0 = arith.constant 0 : index
      %c0_11 = arith.constant 0 : index
      %31 = vector.load %arg2[%c0, %c0_11] : memref<16x128xf32, #tpu.memory_space<vmem>>, vector<16x128xf32>
      %32 = arith.negf %31 : vector<16x128xf32>
      %33 = math.exp %32 : vector<16x128xf32>
      %cst = arith.constant 1.000000e+00 : f32
      %34 = vector.broadcast %cst : f32 to vector<16x128xf32>
      %35 = arith.addf %34, %33 : vector<16x128xf32>
      %36 = arith.divf %34, %35 : vector<16x128xf32>
      %cst_12 = arith.constant 0.000000e+00 : f32
      %37 = vector.broadcast %cst_12 : f32 to vector<16x128xf32>
      %38 = arith.select %30, %36, %37 : vector<16x128xi1>, vector<16x128xf32>
      %c0_13 = arith.constant 0 : index
      %c0_14 = arith.constant 0 : index
      %39 = vector.load %arg3[%c0_13, %c0_14] : memref<16x128xf32, #tpu.memory_space<vmem>>, vector<16x128xf32>
      %cst_15 = arith.constant 0.000000e+00 : f32
      %40 = vector.broadcast %cst_15 : f32 to vector<16x128xf32>
      %41 = arith.select %30, %39, %40 : vector<16x128xi1>, vector<16x128xf32>
      %c0_16 = arith.constant 0 : index
      %c0_17 = arith.constant 0 : index
      %42 = vector.load %arg5[%c0_16, %c0_17] : memref<8x128xf32, #tpu.memory_space<vmem>>, vector<8x128xf32>
      %43 = arith.mulf %38, %41 : vector<16x128xf32>
      %44 = vector.shape_cast %43 : vector<16x128xf32> to vector<2x8x128xf32>
      %cst_18 = arith.constant dense<0.000000e+00> : vector<8x128xf32>
      %45 = vector.multi_reduction <add>, %44, %cst_18 [0] : vector<2x8x128xf32> to vector<8x128xf32>
      %46 = arith.addf %42, %45 : vector<8x128xf32>
      %c0_19 = arith.constant 0 : index
      %c0_20 = arith.constant 0 : index
      %47 = vector.load %arg5[%c0_19, %c0_20] : memref<8x128xf32, #tpu.memory_space<vmem>>, vector<8x128xf32>
      tpu.vector_store %arg5[%c0_19, %c0_20], %46 {strides = array<i32>} : memref<8x128xf32, #tpu.memory_space<vmem>>, vector<8x128xf32>,
      %c0_21 = arith.constant 0 : index
      %c0_22 = arith.constant 0 : index
      %48 = vector.load %arg6[%c0_21, %c0_22] : memref<8x128xf32, #tpu.memory_space<vmem>>, vector<8x128xf32>
      %49 = arith.addf %38, %41 : vector<16x128xf32>
      %50 = vector.shape_cast %49 : vector<16x128xf32> to vector<2x8x128xf32>
      %cst_23 = arith.constant dense<0.000000e+00> : vector<8x128xf32>
      %51 = vector.multi_reduction <add>, %50, %cst_23 [0] : vector<2x8x128xf32> to vector<8x128xf32>
      %52 = arith.addf %48, %51 : vector<8x128xf32>
      %c0_24 = arith.constant 0 : index
      %c0_25 = arith.constant 0 : index
      %53 = vector.load %arg6[%c0_24, %c0_25] : memref<8x128xf32, #tpu.memory_space<vmem>>, vector<8x128xf32>
      tpu.vector_store %arg6[%c0_24, %c0_25], %52 {strides = array<i32>} : memref<8x128xf32, #tpu.memory_space<vmem>>, vector<8x128xf32>,
    } else {
    }
    %c0_i32_6 = arith.constant 0 : i32
    %16 = arith.cmpi eq, %arg1, %c0_i32_6 : i32
    %17 = arith.extui %16 : i1 to i32
    %c0_i32_7 = arith.constant 0 : i32
    %18 = arith.cmpi ne, %17, %c0_i32_7 : i32
    scf.if %18 {
      %c0 = arith.constant 0 : index
      %c0_8 = arith.constant 0 : index
      %19 = vector.load %arg5[%c0, %c0_8] : memref<8x128xf32, #tpu.memory_space<vmem>>, vector<8x128xf32>
      %c0_9 = arith.constant 0 : index
      %c0_10 = arith.constant 0 : index
      %c0_11 = arith.constant 0 : index
      %c0_12 = arith.constant 0 : index
      %20 = vector.load %arg4[%c0_9, %c0_10, %c0_11, %c0_12] : memref<1x2x8x128xf32, #tpu.memory_space<vmem>>, vector<1x1x8x128xf32>
      %21 = vector.shape_cast %20 : vector<1x1x8x128xf32> to vector<8x128xf32>
      %22 = vector.shape_cast %19 : vector<8x128xf32> to vector<1x1x8x128xf32>
      tpu.vector_store %arg4[%c0_9, %c0_10, %c0_11, %c0_12], %22 {strides = array<i32>} : memref<1x2x8x128xf32, #tpu.memory_space<vmem>>, vector<1x1x8x128xf32>,
      %c0_13 = arith.constant 0 : index
      %c0_14 = arith.constant 0 : index
      %23 = vector.load %arg6[%c0_13, %c0_14] : memref<8x128xf32, #tpu.memory_space<vmem>>, vector<8x128xf32>
      %c0_15 = arith.constant 0 : index
      %c1 = arith.constant 1 : index
      %c0_16 = arith.constant 0 : index
      %c0_17 = arith.constant 0 : index
      %24 = vector.load %arg4[%c0_15, %c1, %c0_16, %c0_17] : memref<1x2x8x128xf32, #tpu.memory_space<vmem>>, vector<1x1x8x128xf32>
      %25 = vector.shape_cast %24 : vector<1x1x8x128xf32> to vector<8x128xf32>
      %26 = vector.shape_cast %23 : vector<8x128xf32> to vector<1x1x8x128xf32>
      tpu.vector_store %arg4[%c0_15, %c1, %c0_16, %c0_17], %26 {strides = array<i32>} : memref<1x2x8x128xf32, #tpu.memory_space<vmem>>, vector<1x1x8x128xf32>,
    } else {
    }
    return
  }
  func.func @transform_0(%arg0: i32, %arg1: i32) -> (i32, i32) {
    %c1_i32 = arith.constant 1 : i32
    %0 = arith.muli %arg0, %c1_i32 : i32
    %1 = arith.addi %0, %arg1 : i32
    %c0_i32 = arith.constant 0 : i32
    %2 = arith.minsi %1, %c0_i32 : i32
    %c0_i32_0 = arith.constant 0 : i32
    %c0_i32_1 = arith.constant 0 : i32
    return %2, %c0_i32_0 : i32, i32
  }
  func.func @transform_1(%arg0: i32, %arg1: i32) -> (i32, i32) {
    %c1_i32 = arith.constant 1 : i32
    %0 = arith.muli %arg0, %c1_i32 : i32
    %1 = arith.addi %0, %arg1 : i32
    %c0_i32 = arith.constant 0 : i32
    %2 = arith.minsi %1, %c0_i32 : i32
    %c0_i32_0 = arith.constant 0 : i32
    %c0_i32_1 = arith.constant 0 : i32
    return %2, %c0_i32_0 : i32, i32
  }
  func.func @transform_2(%arg0: i32, %arg1: i32) -> (i32, i32, i32, i32) {
    %c0_i32 = arith.constant 0 : i32
    %c0_i32_0 = arith.constant 0 : i32
    %c0_i32_1 = arith.constant 0 : i32
    %c0_i32_2 = arith.constant 0 : i32
    return %arg0, %c0_i32, %c0_i32_0, %c0_i32_1 : i32, i32, i32, i32
  }
}

</mosaic_0001>

<llo_original>
// kernel: tpu_custom_call.1
$region0: #{tpu_custom_call.1}
  #allocation0 [shape = 'u32[]', space=smem, size = 0x4, offset = 0x4, fixed_abs, tag = 'smem constant byte address 0x4 - core index']
  #allocation1 [shape = 'u32[72,128]{1,0:T(1,128)}', space=vmem, size = 0x9000, scoped, tag = 'internal scratch']
  #allocation2 [shape = 'f32[8,128]{1,0:T(8,128)}', space=vmem, size = 0x1000, scoped, tag = 'scratch operand']
  #allocation3 [shape = 'f32[8,128]{1,0:T(8,128)}', space=vmem, size = 0x1000, scoped, tag = 'scratch operand']
  %s0 = inlined_call_operand.hbm [shape: f32[16,128], index: 0, kind: input, shape index: {}]
  %s1 = inlined_call_operand.hbm [shape: f32[16,128], index: 1, kind: input, shape index: {}]
  %s2 = inlined_call_operand.hbm [shape: f32[2,2,8,128], index: 2, kind: output, shape index: {}]
  %s3 = sld [smem:[#allocation0]]
  $region65: #{tpu_custom_call.1} parent=0
    _
  %s5 = ssub.s32 1, %s3
  %s6 = scalar_select 0, %s5, %s3
  $region1: #{tpu_custom_call.1} parent=0
    #allocation4 [shape = 'u8[16384]{0}', space=vmem, size = 0x4000, scoped, tag = 'input window, operand 0']
    #allocation5 [shape = 's32[2]{0}', space=sflag, size = 0x8, scoped, tag = 'scoped memory for tpu_custom_call.1']
    #allocation6 [shape = 's32[2]{0}', space=sflag, size = 0x8, scoped, tag = 'scoped memory for tpu_custom_call.1']
    #allocation7 [shape = 'u8[16384]{0}', space=vmem, size = 0x4000, scoped, tag = 'input window, operand 1']
    #allocation8 [shape = 's32[2]{0}', space=sflag, size = 0x8, scoped, tag = 'scoped memory for tpu_custom_call.1']
    #allocation9 [shape = 'u8[16384]{0}', space=vmem, size = 0x4000, scoped, tag = 'output window, operand 0']
    %7 = vsyncpa [#allocation5], 0
    %s8 = scalar_lea.sflag [#allocation5], 1
    %9 = vsyncpa %s8, 0
    %10 = vsyncpa [#allocation8], 0
    %s11 = scalar_lea.sflag [#allocation8], 1
    %12 = vsyncpa %s11, 0
    %13 = vsyncpa [#allocation6], 0
    %s14 = scalar_lea.sflag [#allocation6], 1
    %15 = vsyncpa %s14, 0
    loop: start=0, step=1, limit=4
    $region2: #{tpu_custom_call.1} parent=1 // loop_pre_header
      _
    $region3: #{tpu_custom_call.1} parent=1 // loop_header
      %s17 = sphi 0, %s21
      %p18 = scmp.ge.s32.totalorder %s17, 4
      %s24 = sphi 0, %s36
      %s25 = sphi 0, %s32
      %s26 = sphi 0, %s24
      %s27 = sphi 0, %s25
      %s28 = sphi 0, %s26
      %s29 = sphi 0, %s27
      %s45 = sphi 0, %s47
      %s48 = sphi 0, %s45
      %s49 = sphi 0, %s48
      %s65 = sphi 0, %s49
      %s77 = sphi 0, %s79
      %s80 = sphi 0, %s77
      %s81 = sphi 0, %s80
      %s97 = sphi 0, %s81
      %s103 = sphi 0, %s105
      %s106 = sphi 0, %s103
      %s107 = sphi 0, %s106
      %s123 = sphi 0, %s107
    $region4: #{tpu_custom_call.1} parent=1 // loop_header_branch
      %20 = sbr.rel (%p18) target = $region8
    $region5: #{tpu_custom_call.1} parent=1 // loop_body
      %s22 = ssub.s32 %s17, 1
      %s23 = ssub.s32 %s17, 2
      %s30 = sadd.s32 1, %s25
      %p31 = scmp.ge.s32.totalorder %s30, 1
      %s32 = scalar_select %p31, 0, %s30
      %s33 = sadd.s32 1, %s24
      %s34 = scalar_select %p31, %s33, %s24
      %p35 = scmp.ge.s32.totalorder %s34, 2
      %s36 = scalar_select %p35, 0, %s34
      %s37 = sadd.s32 %s24, %s25
      %p38 = scmp.lt.s32.totalorder %s37, 0
      %s39 = scalar_select %p38, %s37, 0
      %s40 = sadd.s32 %s36, %s32
      %p41 = scmp.lt.s32.totalorder %s40, 0
      %s42 = scalar_select %p41, %s40, 0
      %s43 = ssub.s32 %s39, %s42
      %p44 = scmp.eq.s32.totalorder %s43, 0
      %s46 = sadd.s32 %s45, 1
      %s47 = scalar_select %p44, %s45, %s46
      %p50 = pneg %p44
      %p51 = scmp.eq.s32.totalorder %s17, 1
      %p52 = por %p50, %p51
      %p53 = scmp.ne.s32.totalorder %s45, %s48
      %p54 = scmp.eq.s32.totalorder %s17, 0
      %p55 = por %p53, %p54
      %p56 = scmp.ne.s32.totalorder %s45, %s48
      %p57 = scmp.eq.s32.totalorder %s22, 1
      %p58 = por %p56, %p57
      %p59 = scmp.ne.s32.totalorder %s48, %s49
      %p60 = scmp.eq.s32.totalorder %s22, 0
      %p61 = por %p59, %p60
      %p62 = scmp.ne.s32.totalorder %s48, %s49
      %p63 = scmp.eq.s32.totalorder %s23, 1
      %p64 = por %p62, %p63
      %p66 = scmp.ne.s32.totalorder %s49, %s65
      %p67 = scmp.eq.s32.totalorder %s23, 0
      %p68 = por %p66, %p67
      %s69 = sadd.s32 %s24, %s25
      %p70 = scmp.lt.s32.totalorder %s69, 0
      %s71 = scalar_select %p70, %s69, 0
      %s72 = sadd.s32 %s36, %s32
      %p73 = scmp.lt.s32.totalorder %s72, 0
      %s74 = scalar_select %p73, %s72, 0
      %s75 = ssub.s32 %s71, %s74
      %p76 = scmp.eq.s32.totalorder %s75, 0
      %s78 = sadd.s32 %s77, 1
      %s79 = scalar_select %p76, %s77, %s78
      %p82 = pneg %p76
      %p83 = scmp.eq.s32.totalorder %s17, 1
      %p84 = por %p82, %p83
      %p85 = scmp.ne.s32.totalorder %s77, %s80
      %p86 = scmp.eq.s32.totalorder %s17, 0
      %p87 = por %p85, %p86
      %p88 = scmp.ne.s32.totalorder %s77, %s80
      %p89 = scmp.eq.s32.totalorder %s22, 1
      %p90 = por %p88, %p89
      %p91 = scmp.ne.s32.totalorder %s80, %s81
      %p92 = scmp.eq.s32.totalorder %s22, 0
      %p93 = por %p91, %p92
      %p94 = scmp.ne.s32.totalorder %s80, %s81
      %p95 = scmp.eq.s32.totalorder %s23, 1
      %p96 = por %p94, %p95
      %p98 = scmp.ne.s32.totalorder %s81, %s97
      %p99 = scmp.eq.s32.totalorder %s23, 0
      %p100 = por %p98, %p99
      %s101 = ssub.s32 %s24, %s36
      %p102 = scmp.eq.s32.totalorder %s101, 0
      %s104 = sadd.s32 %s103, 1
      %s105 = scalar_select %p102, %s103, %s104
      %p108 = pneg %p102
      %p109 = scmp.eq.s32.totalorder %s17, 1
      %p110 = por %p108, %p109
      %p111 = scmp.ne.s32.totalorder %s103, %s106
      %p112 = scmp.eq.s32.totalorder %s17, 0
      %p113 = por %p111, %p112
      %p114 = scmp.ne.s32.totalorder %s103, %s106
      %p115 = scmp.eq.s32.totalorder %s22, 1
      %p116 = por %p114, %p115
      %p117 = scmp.ne.s32.totalorder %s106, %s107
      %p118 = scmp.eq.s32.totalorder %s22, 0
      %p119 = por %p117, %p118
      %p120 = scmp.ne.s32.totalorder %s106, %s107
      %p121 = scmp.eq.s32.totalorder %s23, 1
      %p122 = por %p120, %p121
      %p124 = scmp.ne.s32.totalorder %s107, %s123
      %p125 = scmp.eq.s32.totalorder %s23, 0
      %p126 = por %p124, %p125
      %p127 = scmp.le.s32.totalorder 1, %s17
      %p128 = scmp.lt.s32.totalorder %s17, 3
      %p129 = pnand %p127, %p128
      %p130 = pneg %p129
      // Predicated region
      $region9: #{tpu_custom_call.1} parent=5 // pred_check
        _
      $region10: #{tpu_custom_call.1} parent=5 // pred_check_branch
        %132 = sbr.rel (%p129) target = $region12
      $region11: #{tpu_custom_call.1} parent=5 // pred_region
        %s133 = ssub.s32 %s17, 1
      $region12: #{tpu_custom_call.1} parent=5 // pred_fallthru
        _
      %p134 = scmp.lt.s32.totalorder %s17, 2
      // Predicated region
      $region13: #{tpu_custom_call.1} parent=5 // pred_check
        %p135 = pneg %p134
      $region14: #{tpu_custom_call.1} parent=5 // pred_check_branch
        %137 = sbr.rel (%p135) target = $region16
      $region15: #{tpu_custom_call.1} parent=5 // pred_region
        // Predicated region
        $region17: #{tpu_custom_call.1} parent=15 // pred_check
          %p138 = pneg %p55
        $region18: #{tpu_custom_call.1} parent=15 // pred_check_branch
          %140 = sbr.rel (%p138) target = $region20
        $region19: #{tpu_custom_call.1} parent=15 // pred_region
          %s141 = sand.u32 %s45, 1
          %s142 = scalar_lea.sflag [#allocation5], %s141
          %s143 = sand.u32 %s45, 1
          %s144 = smul.addr %s143, 16
          %s145 = scalar_lea.vmem [#allocation4], %s144
          %s146 = sadd.s32 %s24, %s25
          %p147 = scmp.lt.s32.totalorder %s146, 0
          %s148 = scalar_select %p147, %s146, 0
          %s149 = smul.u32 2, %s148
          %151 = vsyncadd %s142, 0
          %s152 = smul.addr %s149, 8
          %s153 = scalar_lea.hbm %s0, %s152
          %s154 = sshll.u32 %s153, 4
          %s155 = int_to_ptr.hbm [resolvable:$true] %s154
          %s156 = sshll.u32 %s145, 4
          %s157 = int_to_ptr.vmem [resolvable:$true] %s156
          %162 = dma.hbm_to_vmem [thread:$0]  %s155, 256, %s157, %s142, 128, 128, 8
        $region20: #{tpu_custom_call.1} parent=15 // pred_fallthru
          _
        // Predicated region
        $region21: #{tpu_custom_call.1} parent=15 // pred_check
          %p163 = pneg %p87
        $region22: #{tpu_custom_call.1} parent=15 // pred_check_branch
          %165 = sbr.rel (%p163) target = $region24
        $region23: #{tpu_custom_call.1} parent=15 // pred_region
          %s166 = sand.u32 %s77, 1
          %s167 = scalar_lea.sflag [#allocation8], %s166
          %s168 = sand.u32 %s77, 1
          %s169 = smul.addr %s168, 16
          %s170 = scalar_lea.vmem [#allocation7], %s169
          %s171 = sadd.s32 %s24, %s25
          %p172 = scmp.lt.s32.totalorder %s171, 0
          %s173 = scalar_select %p172, %s171, 0
          %s174 = smul.u32 2, %s173
          %176 = vsyncadd %s167, 0
          %s177 = smul.addr %s174, 8
          %s178 = scalar_lea.hbm %s1, %s177
          %s179 = sshll.u32 %s178, 4
          %s180 = int_to_ptr.hbm [resolvable:$true] %s179
          %s181 = sshll.u32 %s170, 4
          %s182 = int_to_ptr.vmem [resolvable:$true] %s181
          %187 = dma.hbm_to_vmem [thread:$0]  %s180, 256, %s182, %s167, 128, 128, 8
        $region24: #{tpu_custom_call.1} parent=15 // pred_fallthru
          _
      $region16: #{tpu_custom_call.1} parent=5 // pred_fallthru
        _
      %p188 = scmp.le.s32.totalorder 1, %s17
      %p189 = scmp.lt.s32.totalorder %s17, 3
      %p190 = pnand %p188, %p189
      %p191 = pneg %p190
      // Predicated region
      $region25: #{tpu_custom_call.1} parent=5 // pred_check
        _
      $region26: #{tpu_custom_call.1} parent=5 // pred_check_branch
        %193 = sbr.rel (%p190) target = $region28
      $region27: #{tpu_custom_call.1} parent=5 // pred_region
        %s194 = ssub.s32 %s17, 1
        %s195 = sand.u32 %s48, 1
        %s196 = scalar_lea.sflag [#allocation5], %s195
        %s197 = sand.u32 %s48, 1
        %s198 = smul.addr %s197, 16
        %s199 = scalar_lea.vmem [#allocation4], %s198
        // Predicated region
        $region29: #{tpu_custom_call.1} parent=27 // pred_check
          %p200 = pneg %p61
        $region30: #{tpu_custom_call.1} parent=27 // pred_check_branch
          %202 = sbr.rel (%p200) target = $region32
        $region31: #{tpu_custom_call.1} parent=27 // pred_region
          %204 = dma.done %s196, 256
        $region32: #{tpu_custom_call.1} parent=27 // pred_fallthru
          _
        %s205 = sand.u32 %s80, 1
        %s206 = scalar_lea.sflag [#allocation8], %s205
        %s207 = sand.u32 %s80, 1
        %s208 = smul.addr %s207, 16
        %s209 = scalar_lea.vmem [#allocation7], %s208
        // Predicated region
        $region33: #{tpu_custom_call.1} parent=27 // pred_check
          %p210 = pneg %p93
        $region34: #{tpu_custom_call.1} parent=27 // pred_check_branch
          %212 = sbr.rel (%p210) target = $region36
        $region35: #{tpu_custom_call.1} parent=27 // pred_region
          %214 = dma.done %s206, 256
        $region36: #{tpu_custom_call.1} parent=27 // pred_fallthru
          _
        %s215 = sand.u32 %s48, 1
        %s216 = scalar_lea.sflag [#allocation5], %s215
        %s217 = sand.u32 %s48, 1
        %s218 = smul.addr %s217, 16
        %s219 = scalar_lea.vmem [#allocation4], %s218
        %p220 = pneg %p61
        %p221 = pneg %p58
        %s222 = sand.u32 %s80, 1
        %s223 = scalar_lea.sflag [#allocation8], %s222
        %s224 = sand.u32 %s80, 1
        %s225 = smul.addr %s224, 16
        %s226 = scalar_lea.vmem [#allocation7], %s225
        %p227 = pneg %p93
        %p228 = pneg %p90
        %p229 = pneg %p119
        %p230 = pneg %p116
        %s231 = sand.u32 %s106, 1
        %s232 = scalar_lea.sflag [#allocation6], %s231
        %s233 = sand.u32 %s106, 1
        %s234 = smul.addr %s233, 16
        %s235 = scalar_lea.vmem [#allocation9], %s234
        %s236 = sadd.s32 %s26, %s27
        %p237 = scmp.lt.s32.totalorder %s236, 0
        %s238 = scalar_select %p237, %s236, 0
        %s239 = smul.u32 2, %s238
        %s240 = sadd.s32 %s26, %s27
        %p241 = scmp.lt.s32.totalorder %s240, 0
        %s242 = scalar_select %p241, %s240, 0
        %s243 = smul.u32 2, %s242
        %s244 = sadd.s32 %s26, %s27
        %p245 = scmp.eq.s32.totalorder %s27, 0
        // Predicated region
        $region37: #{tpu_custom_call.1} parent=27 // pred_check
          %p246 = pneg %p245
        $region38: #{tpu_custom_call.1} parent=27 // pred_check_branch
          %248 = sbr.rel (%p246) target = $region40
        $region39: #{tpu_custom_call.1} parent=27 // pred_region
          %249 = vst [vmem:[#allocation2] sm:$0xff] 0.0
          %250 = vst [vmem:[#allocation3] sm:$0xff] 0.0
        $region40: #{tpu_custom_call.1} parent=27 // pred_fallthru
          _
        %s251 = smul.u32 %s244, 16
        %p252 = scmp.lt.s32.totalorder %s244, 1
        %s253 = sadd.s32 %s251, 16
        %p254 = scmp.le.s32.totalorder %s253, 16
        %p255 = pnand %p252, %p254
        %p256 = pneg %p255
        // Predicated region
        $region41: #{tpu_custom_call.1} parent=27 // pred_check
          _
        $region42: #{tpu_custom_call.1} parent=27 // pred_check_branch
          %258 = sbr.rel (%p255) target = $region44
        $region43: #{tpu_custom_call.1} parent=27 // pred_region
          %v259 = vld [vmem:[%s199] sm:$0xff]
          %v260 = vld [vmem:[%s199 + $0x8] sm:$0xff]
          %v261 = vxor.u32 %v259, 2147483648
          %v262 = vxor.u32 %v260, 2147483648
          %v263 = vmul.f32 %v261, 1.442695
          %v264 = vpow.pop %v263
          %v265 = vmul.f32 %v262, 1.442695
          %v266 = vpow.pop %v265
          %v267 = vadd.f32 %v264, 1.0
          %v268 = vadd.f32 %v266, 1.0
          %v269 = vrcp.pop %v267
          %v270 = vmul.f32 %v267, %v269
          %v271 = vsub.f32 1.0, %v270
          %v272 = vmul.f32 %v269, %v271
          %v273 = vadd.f32 %v269, %v272
          %vm274 = vweird.f32 %v267
          %vm275 = vweird.f32 %v269
          %vm276 = vmor %vm274, %vm275
          %v277 = vsel %vm276, %v269, %v273
          %v278 = vand.u32 2147483647, %v267
          %vm279 = vcmp.eq.f32.partialorder %v278, 8.507059e+37
          %v280 = vand.u32 %v267, 2147483648
          %v281 = vor.u32 1.1754944e-38, %v280
          %v282 = vsel %vm279, %v281, %v277
          %v283 = vmul.f32 1.0, %v282
          %v284 = vrcp.pop %v268
          %v285 = vmul.f32 %v268, %v284
          %v286 = vsub.f32 1.0, %v285
          %v287 = vmul.f32 %v284, %v286
          %v288 = vadd.f32 %v284, %v287
          %vm289 = vweird.f32 %v268
          %vm290 = vweird.f32 %v284
          %vm291 = vmor %vm289, %vm290
          %v292 = vsel %vm291, %v284, %v288
          %v293 = vand.u32 2147483647, %v268
          %vm294 = vcmp.eq.f32.partialorder %v293, 8.507059e+37
          %v295 = vand.u32 %v268, 2147483648
          %v296 = vor.u32 1.1754944e-38, %v295
          %v297 = vsel %vm294, %v296, %v292
          %v298 = vmul.f32 1.0, %v297
          %v299 = vld [vmem:[%s209] sm:$0xff]
          %v300 = vld [vmem:[%s209 + $0x8] sm:$0xff]
          %v301 = vld [vmem:[#allocation2] sm:$0xff]
          %v302 = vmul.f32 %v283, %v299
          %v303 = vmul.f32 %v298, %v300
          %v304 = vadd.f32 %v302, %v303
          %v305 = vadd.f32 %v301, %v304
          %306 = vst [vmem:[#allocation2] sm:$0xff] %v305
          %v307 = vld [vmem:[#allocation3] sm:$0xff]
          %v308 = vadd.f32 %v283, %v299
          %v309 = vadd.f32 %v298, %v300
          %v310 = vadd.f32 %v308, %v309
          %v311 = vadd.f32 %v307, %v310
          %312 = vst [vmem:[#allocation3] sm:$0xff] %v311
        $region44: #{tpu_custom_call.1} parent=27 // pred_fallthru
          _
        %p313 = scmp.gt.s32.totalorder %s253, 16
        %p314 = pnand %p252, %p313
        %p315 = pneg %p314
        // Predicated region
        $region45: #{tpu_custom_call.1} parent=27 // pred_check
          _
        $region46: #{tpu_custom_call.1} parent=27 // pred_check_branch
          %317 = sbr.rel (%p314) target = $region48
        $region47: #{tpu_custom_call.1} parent=27 // pred_region
          %v318 = vlaneseq
          %v319 = vshrl.u32 %v318, 7
          %v320 = vadd.s32 %v319, 8
          %v321 = vstv %s251
          %v322 = vadd.s32 %v321, %v319
          %v323 = vadd.s32 %v321, %v320
          %v324 = vlaneseq
          %v325 = vand.u32 %v324, 127
          %vm326 = vcmp.lt.s32.totalorder %v322, 16
          %vm327 = vcmp.lt.s32.totalorder %v323, 16
          %vm328 = vcmp.eq.s32.totalorder %v322, 16
          %vm329 = vcmp.eq.s32.totalorder %v323, 16
          %vm330 = vcmp.lt.s32.totalorder %v325, 0
          %vm331 = vmand %vm328, %vm330
          %vm332 = vmand %vm329, %vm330
          %vm333 = vmor %vm326, %vm331
          %vm334 = vmor %vm327, %vm332
          %v335 = vld [vmem:[%s199] sm:$0xff]
          %v336 = vld [vmem:[%s199 + $0x8] sm:$0xff]
          %v337 = vxor.u32 %v335, 2147483648
          %v338 = vxor.u32 %v336, 2147483648
          %v339 = vmul.f32 %v337, 1.442695
          %v340 = vpow.pop %v339
          %v341 = vmul.f32 %v338, 1.442695
          %v342 = vpow.pop %v341
          %v343 = vadd.f32 %v340, 1.0
          %v344 = vadd.f32 %v342, 1.0
          %v345 = vrcp.pop %v343
          %v346 = vmul.f32 %v343, %v345
          %v347 = vsub.f32 1.0, %v346
          %v348 = vmul.f32 %v345, %v347
          %v349 = vadd.f32 %v345, %v348
          %vm350 = vweird.f32 %v343
          %vm351 = vweird.f32 %v345
          %vm352 = vmor %vm350, %vm351
          %v353 = vsel %vm352, %v345, %v349
          %v354 = vand.u32 2147483647, %v343
          %vm355 = vcmp.eq.f32.partialorder %v354, 8.507059e+37
          %v356 = vand.u32 %v343, 2147483648
          %v357 = vor.u32 1.1754944e-38, %v356
          %v358 = vsel %vm355, %v357, %v353
          %v359 = vmul.f32 1.0, %v358
          %v360 = vrcp.pop %v344
          %v361 = vmul.f32 %v344, %v360
          %v362 = vsub.f32 1.0, %v361
          %v363 = vmul.f32 %v360, %v362
          %v364 = vadd.f32 %v360, %v363
          %vm365 = vweird.f32 %v344
          %vm366 = vweird.f32 %v360
          %vm367 = vmor %vm365, %vm366
          %v368 = vsel %vm367, %v360, %v364
          %v369 = vand.u32 2147483647, %v344
          %vm370 = vcmp.eq.f32.partialorder %v369, 8.507059e+37
          %v371 = vand.u32 %v344, 2147483648
          %v372 = vor.u32 1.1754944e-38, %v371
          %v373 = vsel %vm370, %v372, %v368
          %v374 = vmul.f32 1.0, %v373
          %v375 = vsel %vm333, %v359, 0.0
          %v376 = vsel %vm334, %v374, 0.0
          %v377 = vld [vmem:[%s209] sm:$0xff]
          %v378 = vld [vmem:[%s209 + $0x8] sm:$0xff]
          %v379 = vsel %vm333, %v377, 0.0
          %v380 = vsel %vm334, %v378, 0.0
          %v381 = vld [vmem:[#allocation2] sm:$0xff]
          %v382 = vmul.f32 %v375, %v379
          %v383 = vmul.f32 %v376, %v380
          %v384 = vadd.f32 %v382, %v383
          %v385 = vadd.f32 %v381, %v384
          %386 = vst [vmem:[#allocation2] sm:$0xff] %v385
          %v387 = vld [vmem:[#allocation3] sm:$0xff]
          %v388 = vadd.f32 %v375, %v379
          %v389 = vadd.f32 %v376, %v380
          %v390 = vadd.f32 %v388, %v389
          %v391 = vadd.f32 %v387, %v390
          %392 = vst [vmem:[#allocation3] sm:$0xff] %v391
        $region48: #{tpu_custom_call.1} parent=27 // pred_fallthru
          _
        // Predicated region
        $region49: #{tpu_custom_call.1} parent=27 // pred_check
          %p393 = pneg %p245
        $region50: #{tpu_custom_call.1} parent=27 // pred_check_branch
          %395 = sbr.rel (%p393) target = $region52
        $region51: #{tpu_custom_call.1} parent=27 // pred_region
          %v396 = vld [vmem:[#allocation2] sm:$0xff]
          %397 = vst [vmem:[%s235] sm:$0xff] %v396
          %v398 = vld [vmem:[#allocation3] sm:$0xff]
          %s399 = scalar_lea.vmem %s235, 8 [#allocation9]
          %400 = vst [vmem:[%s399] sm:$0xff] %v398
        $region52: #{tpu_custom_call.1} parent=27 // pred_fallthru
          _
        %s401 = sand.u32 %s106, 1
        %s402 = scalar_lea.sflag [#allocation6], %s401
        %s403 = sand.u32 %s106, 1
        %s404 = smul.addr %s403, 16
        %s405 = scalar_lea.vmem [#allocation9], %s404
        // Predicated region
        $region53: #{tpu_custom_call.1} parent=27 // pred_check
          %p406 = pneg %p116
        $region54: #{tpu_custom_call.1} parent=27 // pred_check_branch
          %408 = sbr.rel (%p406) target = $region56
        $region55: #{tpu_custom_call.1} parent=27 // pred_region
          %410 = vsyncadd %s402, 0
          %s411 = smul.addr %s26, 2
          %s412 = smul.addr %s411, 8
          %s413 = scalar_lea.hbm %s2, %s412
          %s414 = sshll.u32 %s405, 4
          %s415 = int_to_ptr.vmem [resolvable:$true] %s414
          %s416 = sshll.u32 %s413, 4
          %s417 = int_to_ptr.hbm [resolvable:$true] %s416
          %422 = dma.vmem_to_hbm [thread:$0]  %s415, 256, %s417, %s402, 128, 128, 8
        $region56: #{tpu_custom_call.1} parent=27 // pred_fallthru
          _
      $region28: #{tpu_custom_call.1} parent=5 // pred_fallthru
        _
      %p423 = scmp.le.s32.totalorder 2, %s17
      // Predicated region
      $region57: #{tpu_custom_call.1} parent=5 // pred_check
        %p424 = pneg %p423
      $region58: #{tpu_custom_call.1} parent=5 // pred_check_branch
        %426 = sbr.rel (%p424) target = $region60
      $region59: #{tpu_custom_call.1} parent=5 // pred_region
        %s427 = ssub.s32 %s17, 2
        // Predicated region
        $region61: #{tpu_custom_call.1} parent=59 // pred_check
          %p428 = pneg %p122
        $region62: #{tpu_custom_call.1} parent=59 // pred_check_branch
          %430 = sbr.rel (%p428) target = $region64
        $region63: #{tpu_custom_call.1} parent=59 // pred_region
          %s431 = sand.u32 %s107, 1
          %s432 = scalar_lea.sflag [#allocation6], %s431
          %s433 = sand.u32 %s107, 1
          %s434 = smul.addr %s433, 16
          %s435 = scalar_lea.vmem [#allocation9], %s434
          %437 = dma.done %s432, 256
        $region64: #{tpu_custom_call.1} parent=59 // pred_fallthru
          _
      $region60: #{tpu_custom_call.1} parent=5 // pred_fallthru
        _
    $region6: #{tpu_custom_call.1} parent=1 // loop_footer
      %s21 = sadd.s32 1, %s17
    $region7: #{tpu_custom_call.1} parent=1 // loop_footer_branch
      %16 = sbr.rel target = $region3
    $region8: #{tpu_custom_call.1} parent=1 // loop_exit
      _
    %438 = vsyncpa [#allocation5], 1
    %s439 = scalar_lea.sflag [#allocation5], 1
    %440 = vsyncpa %s439, 1
    %441 = vsyncpa [#allocation8], 1
    %s442 = scalar_lea.sflag [#allocation8], 1
    %443 = vsyncpa %s442, 1
    %444 = vsyncpa [#allocation6], 1
    %s445 = scalar_lea.sflag [#allocation6], 1
    %446 = vsyncpa %s445, 1

</llo_original>
